<compile_context>
chip_gen: v7x
topology: tpu7x:2x2x1
jax: 0.10.0
libtpu: 0.0.40
codegen_flags: <defaults>
</compile_context>

<pallas_src>
import jax
import jax.numpy as jnp
from jax.experimental import pallas as pl
from jax.experimental.pallas import tpu as pltpu

_LANES = 128


def _threshold_kernel(thr_ref, f1_ref, f2_ref, o_ref):
    # thr_ref: SMEM (4,) f32 -> [t1_low, t1_high, t2_low, t2_high]
    t1_low = thr_ref[0]
    t1_high = thr_ref[1]
    t2_low = thr_ref[2]
    t2_high = thr_ref[3]

    f1 = f1_ref[...]
    f2 = f2_ref[...]

    within = (f1 >= t1_low) & (f1 <= t1_high) & (f2 >= t2_low) & (f2 <= t2_high)
    o_ref[...] = jnp.where(within, jnp.float32(0.0), jnp.float32(1.0))


def _round_up(x, m):
    return (x + m - 1) // m * m


def threshold_layer(feature1, feature2, thresholds, *, block_rows=1024,
                    use_pallas=None):
    """Pallas implementation of ThresholdLayer.forward.

    feature1, feature2: same-shape float arrays (any shape).
    thresholds: (4,) float32 = [t1_low, t1_high, t2_low, t2_high].
    Returns float32 risk score (matching PyTorch's `.float()`), same shape as
    feature1.
    """
    assert feature1.shape == feature2.shape
    orig_shape = feature1.shape
    n = feature1.size
    thresholds = jnp.asarray(thresholds, dtype=jnp.float32)

    # For tiny inputs, a single fused XLA expression beats a pallas_call
    # launch; gate on size unless the caller forces a choice.
    if use_pallas is None:
        use_pallas = n >= (1 << 16)
    if not use_pallas:
        w1 = (feature1 >= thresholds[0]) & (feature1 <= thresholds[1])
        w2 = (feature2 >= thresholds[2]) & (feature2 <= thresholds[3])
        return jnp.where(w1 & w2, jnp.float32(0.0), jnp.float32(1.0))

    lanes = _LANES
    f1 = feature1.reshape(-1)
    f2 = feature2.reshape(-1)

    # Pad only to a multiple of 128 lanes (no-op in the common conv case).
    pad = (-n) % lanes
    if pad:
        f1 = jnp.pad(f1, (0, pad))
        f2 = jnp.pad(f2, (0, pad))
    rows = (n + pad) // lanes
    f1 = f1.reshape(rows, lanes)
    f2 = f2.reshape(rows, lanes)

    # Big lane-dense blocks, but keep >= 2 grid steps when the input allows it
    # so the "parallel" axis can shard across v7x's two TensorCores.
    br = min(block_rows, max(8, _round_up(pl.cdiv(rows, 2), 8)))
    br = min(br, _round_up(rows, 8))          # never (much) bigger than the array
    grid = (pl.cdiv(rows, br),)               # Pallas masks the partial edge block

    out = pl.pallas_call(
        _threshold_kernel,
        out_shape=jax.ShapeDtypeStruct((rows, lanes), jnp.float32),
        grid_spec=pltpu.PrefetchScalarGridSpec(
            num_scalar_prefetch=1,            # thresholds -> SMEM
            grid=grid,
            in_specs=[
                pl.BlockSpec((br, lanes), lambda i, thr: (i, 0)),
                pl.BlockSpec((br, lanes), lambda i, thr: (i, 0)),
            ],
            out_specs=pl.BlockSpec((br, lanes), lambda i, thr: (i, 0)),
        ),
        compiler_params=pltpu.CompilerParams(
            dimension_semantics=("parallel",),
        ),
    )(thresholds, f1, f2)

    flat = out.reshape(-1)
    if pad:
        flat = flat[:n]
    return flat.reshape(orig_shape)


if __name__ == "__main__":
    key = jax.random.PRNGKey(0)
    k1, k2, k3, k4 = jax.random.split(key, 4)

    # Deterministic parameter init matching nn.Parameter defaults in __init__:
    # threshold1_low=0.0, threshold1_high=1.0, threshold2_low=0.0, threshold2_high=1.0
    thresholds = jnp.array([0.0, 1.0, 0.0, 1.0], dtype=jnp.float32)

    def ref_fn(a, b, thr):
        w1 = (a >= thr[0]) & (a <= thr[1])
        w2 = (b >= thr[2]) & (b <= thr[3])
        return 1.0 - (w1 & w2).astype(jnp.float32)

    # Case 1: small conv-style feature maps (NCHW), lane-aligned (2048 = 16x128).
    shape = (2, 4, 16, 16)
    feature1 = jax.random.normal(k1, shape, dtype=jnp.float32)
    feature2 = jax.random.normal(k2, shape, dtype=jnp.float32)
    risk = threshold_layer(feature1, feature2, thresholds, use_pallas=True)
    risk = jax.block_until_ready(risk)
    ref = ref_fn(feature1, feature2, thresholds)
    assert risk.shape == shape and risk.dtype == jnp.float32
    assert bool(jnp.all(risk == ref))

    # Case 2: ragged element count (exercises the pad + partial-edge-block path).
    shape2 = (3, 5, 7, 11)
    g1 = jax.random.normal(k3, shape2, dtype=jnp.float32)
    g2 = jax.random.normal(k4, shape2, dtype=jnp.float32)
    risk2 = threshold_layer(g1, g2, thresholds, use_pallas=True)
    risk2 = jax.block_until_ready(risk2)
    ref2 = ref_fn(g1, g2, thresholds)
    assert risk2.shape == shape2 and risk2.dtype == jnp.float32
    assert bool(jnp.all(risk2 == ref2))

    print("KERNEL_OK")
</pallas_src>

<mosaic_0001>
module attributes {stable_mosaic.version = 11 : i64} {
  func.func @_threshold_kernel(%arg0: i32, %arg1: memref<4xf32, #tpu.memory_space<smem>>, %arg2: memref<8x128xf32, #tpu.memory_space<vmem>>, %arg3: memref<8x128xf32, #tpu.memory_space<vmem>>, %arg4: memref<8x128xf32, #tpu.memory_space<vmem>>) attributes {dimension_semantics = [#tpu.dimension_semantics<parallel>], iteration_bounds = array<i64: 2>, scalar_prefetch = 1 : i64, scratch_operands = 0 : i64, tpu.core_type = #tpu.core_type<tc>, window_params = [{transform_indices = @transform_0, window_bounds = array<i64: 8, 128>}, {transform_indices = @transform_1, window_bounds = array<i64: 8, 128>}, {transform_indices = @transform_2, window_bounds = array<i64: 8, 128>}]} {
    %c0 = arith.constant 0 : index
    %0 = memref.load %arg1[%c0] : memref<4xf32, #tpu.memory_space<smem>>
    %c1 = arith.constant 1 : index
    %1 = memref.load %arg1[%c1] : memref<4xf32, #tpu.memory_space<smem>>
    %c2 = arith.constant 2 : index
    %2 = memref.load %arg1[%c2] : memref<4xf32, #tpu.memory_space<smem>>
    %c3 = arith.constant 3 : index
    %3 = memref.load %arg1[%c3] : memref<4xf32, #tpu.memory_space<smem>>
    %c0_0 = arith.constant 0 : index
    %c0_1 = arith.constant 0 : index
    %4 = vector.load %arg2[%c0_0, %c0_1] : memref<8x128xf32, #tpu.memory_space<vmem>>, vector<8x128xf32>
    %c0_2 = arith.constant 0 : index
    %c0_3 = arith.constant 0 : index
    %5 = vector.load %arg3[%c0_2, %c0_3] : memref<8x128xf32, #tpu.memory_space<vmem>>, vector<8x128xf32>
    %6 = vector.broadcast %0 : f32 to vector<8x128xf32>
    %7 = arith.cmpf oge, %4, %6 : vector<8x128xf32>
    %8 = vector.broadcast %1 : f32 to vector<8x128xf32>
    %9 = arith.cmpf ole, %4, %8 : vector<8x128xf32>
    %10 = arith.andi %7, %9 : vector<8x128xi1>
    %11 = vector.broadcast %2 : f32 to vector<8x128xf32>
    %12 = arith.cmpf oge, %5, %11 : vector<8x128xf32>
    %13 = arith.andi %10, %12 : vector<8x128xi1>
    %14 = vector.broadcast %3 : f32 to vector<8x128xf32>
    %15 = arith.cmpf ole, %5, %14 : vector<8x128xf32>
    %16 = arith.andi %13, %15 : vector<8x128xi1>
    %cst = arith.constant 0.000000e+00 : f32
    %cst_4 = arith.constant 1.000000e+00 : f32
    %17 = vector.broadcast %cst : f32 to vector<8x128xf32>
    %18 = vector.broadcast %cst_4 : f32 to vector<8x128xf32>
    %19 = arith.select %16, %17, %18 : vector<8x128xi1>, vector<8x128xf32>
    %c0_5 = arith.constant 0 : index
    %c0_6 = arith.constant 0 : index
    %20 = vector.load %arg4[%c0_5, %c0_6] : memref<8x128xf32, #tpu.memory_space<vmem>>, vector<8x128xf32>
    tpu.vector_store %arg4[%c0_5, %c0_6], %19 {strides = array<i32>} : memref<8x128xf32, #tpu.memory_space<vmem>>, vector<8x128xf32>,
    return
  }
  func.func @transform_0(%arg0: i32, %arg1: memref<4xf32, #tpu.memory_space<smem>>) -> (i32, i32) {
    %c0_i32 = arith.constant 0 : i32
    %c0_i32_0 = arith.constant 0 : i32
    return %arg0, %c0_i32 : i32, i32
  }
  func.func @transform_1(%arg0: i32, %arg1: memref<4xf32, #tpu.memory_space<smem>>) -> (i32, i32) {
    %c0_i32 = arith.constant 0 : i32
    %c0_i32_0 = arith.constant 0 : i32
    return %arg0, %c0_i32 : i32, i32
  }
  func.func @transform_2(%arg0: i32, %arg1: memref<4xf32, #tpu.memory_space<smem>>) -> (i32, i32) {
    %c0_i32 = arith.constant 0 : i32
    %c0_i32_0 = arith.constant 0 : i32
    return %arg0, %c0_i32 : i32, i32
  }
}

</mosaic_0001>

<llo_original>
// kernel: tpu_custom_call.1
$region0: #{tpu_custom_call.1}
  #allocation0 [shape = 'u32[]', space=smem, size = 0x4, offset = 0x4, fixed_abs, tag = 'smem constant byte address 0x4 - core index']
  #allocation1 [shape = 'u32[144,128]{1,0:T(1,128)}', space=vmem, size = 0x12000, scoped, tag = 'internal scratch']
  #allocation2 [shape = 's32[1]{0}', space=sflag, size = 0x4, scoped, tag = 'scoped memory for tpu_custom_call.1']
  #allocation3 [shape = 'u8[512]{0}', space=smem, size = 0x200, scoped, tag = 'prefetched SMEM operand 0']
  %s0 = inlined_call_operand.hbm [shape: f32[4], index: 0, kind: input, shape index: {}]
  %s1 = inlined_call_operand.hbm [shape: f32[16,128], index: 1, kind: input, shape index: {}]
  %s2 = inlined_call_operand.hbm [shape: f32[16,128], index: 2, kind: input, shape index: {}]
  %s3 = inlined_call_operand.hbm [shape: f32[16,128], index: 3, kind: output, shape index: {}]
  %s4 = sld [smem:[#allocation0]]
  $region49: #{tpu_custom_call.1} parent=0
    _
  %s6 = ssub.s32 1, %s4
  %s7 = scalar_select 0, %s6, %s4
  %9 = dma.hbm_to_smem %s0, 16, [#allocation3], [#allocation2]
  %10 = dma.done [#allocation2], 16
  %11 = sfence
  $region1: #{tpu_custom_call.1} parent=0
    #allocation4 [shape = 'u8[8192]{0}', space=vmem, size = 0x2000, scoped, tag = 'input window, operand 1']
    #allocation5 [shape = 's32[2]{0}', space=sflag, size = 0x8, scoped, tag = 'scoped memory for tpu_custom_call.1']
    #allocation6 [shape = 's32[2]{0}', space=sflag, size = 0x8, scoped, tag = 'scoped memory for tpu_custom_call.1']
    #allocation7 [shape = 'u8[8192]{0}', space=vmem, size = 0x2000, scoped, tag = 'input window, operand 2']
    #allocation8 [shape = 's32[2]{0}', space=sflag, size = 0x8, scoped, tag = 'scoped memory for tpu_custom_call.1']
    #allocation9 [shape = 'u8[8192]{0}', space=vmem, size = 0x2000, scoped, tag = 'output window, operand 0']
    %12 = vsyncpa [#allocation5], 0
    %s13 = scalar_lea.sflag [#allocation5], 1
    %14 = vsyncpa %s13, 0
    %15 = vsyncpa [#allocation8], 0
    %s16 = scalar_lea.sflag [#allocation8], 1
    %17 = vsyncpa %s16, 0
    %18 = vsyncpa [#allocation6], 0
    %s19 = scalar_lea.sflag [#allocation6], 1
    %20 = vsyncpa %s19, 0
    loop: start=0, step=1, limit=4
    $region2: #{tpu_custom_call.1} parent=1 // loop_pre_header
      _
    $region3: #{tpu_custom_call.1} parent=1 // loop_header
      %s22 = sphi 0, %s26
      %p23 = scmp.ge.s32.totalorder %s22, 4
      %s32 = sphi 0, %s34
      %s35 = sphi 0, %s32
      %s36 = sphi 0, %s35
      %s52 = sphi 0, %s36
      %s58 = sphi 0, %s60
      %s61 = sphi 0, %s58
      %s62 = sphi 0, %s61
      %s78 = sphi 0, %s62
      %s84 = sphi 0, %s86
      %s87 = sphi 0, %s84
      %s88 = sphi 0, %s87
      %s104 = sphi 0, %s88
    $region4: #{tpu_custom_call.1} parent=1 // loop_header_branch
      %25 = sbr.rel (%p23) target = $region8
    $region5: #{tpu_custom_call.1} parent=1 // loop_body
      %s27 = ssub.s32 %s22, 1
      %s28 = ssub.s32 %s22, 2
      %s29 = sadd.s32 %s22, 1
      %s30 = ssub.s32 %s22, %s29
      %p31 = scmp.eq.s32.totalorder %s30, 0
      %s33 = sadd.s32 %s32, 1
      %s34 = scalar_select %p31, %s32, %s33
      %p37 = pneg %p31
      %p38 = scmp.eq.s32.totalorder %s22, 1
      %p39 = por %p37, %p38
      %p40 = scmp.ne.s32.totalorder %s32, %s35
      %p41 = scmp.eq.s32.totalorder %s22, 0
      %p42 = por %p40, %p41
      %p43 = scmp.ne.s32.totalorder %s32, %s35
      %p44 = scmp.eq.s32.totalorder %s27, 1
      %p45 = por %p43, %p44
      %p46 = scmp.ne.s32.totalorder %s35, %s36
      %p47 = scmp.eq.s32.totalorder %s27, 0
      %p48 = por %p46, %p47
      %p49 = scmp.ne.s32.totalorder %s35, %s36
      %p50 = scmp.eq.s32.totalorder %s28, 1
      %p51 = por %p49, %p50
      %p53 = scmp.ne.s32.totalorder %s36, %s52
      %p54 = scmp.eq.s32.totalorder %s28, 0
      %p55 = por %p53, %p54
      %s56 = ssub.s32 %s22, %s29
      %p57 = scmp.eq.s32.totalorder %s56, 0
      %s59 = sadd.s32 %s58, 1
      %s60 = scalar_select %p57, %s58, %s59
      %p63 = pneg %p57
      %p64 = scmp.eq.s32.totalorder %s22, 1
      %p65 = por %p63, %p64
      %p66 = scmp.ne.s32.totalorder %s58, %s61
      %p67 = scmp.eq.s32.totalorder %s22, 0
      %p68 = por %p66, %p67
      %p69 = scmp.ne.s32.totalorder %s58, %s61
      %p70 = scmp.eq.s32.totalorder %s27, 1
      %p71 = por %p69, %p70
      %p72 = scmp.ne.s32.totalorder %s61, %s62
      %p73 = scmp.eq.s32.totalorder %s27, 0
      %p74 = por %p72, %p73
      %p75 = scmp.ne.s32.totalorder %s61, %s62
      %p76 = scmp.eq.s32.totalorder %s28, 1
      %p77 = por %p75, %p76
      %p79 = scmp.ne.s32.totalorder %s62, %s78
      %p80 = scmp.eq.s32.totalorder %s28, 0
      %p81 = por %p79, %p80
      %s82 = ssub.s32 %s22, %s29
      %p83 = scmp.eq.s32.totalorder %s82, 0
      %s85 = sadd.s32 %s84, 1
      %s86 = scalar_select %p83, %s84, %s85
      %p89 = pneg %p83
      %p90 = scmp.eq.s32.totalorder %s22, 1
      %p91 = por %p89, %p90
      %p92 = scmp.ne.s32.totalorder %s84, %s87
      %p93 = scmp.eq.s32.totalorder %s22, 0
      %p94 = por %p92, %p93
      %p95 = scmp.ne.s32.totalorder %s84, %s87
      %p96 = scmp.eq.s32.totalorder %s27, 1
      %p97 = por %p95, %p96
      %p98 = scmp.ne.s32.totalorder %s87, %s88
      %p99 = scmp.eq.s32.totalorder %s27, 0
      %p100 = por %p98, %p99
      %p101 = scmp.ne.s32.totalorder %s87, %s88
      %p102 = scmp.eq.s32.totalorder %s28, 1
      %p103 = por %p101, %p102
      %p105 = scmp.ne.s32.totalorder %s88, %s104
      %p106 = scmp.eq.s32.totalorder %s28, 0
      %p107 = por %p105, %p106
      %p108 = scmp.le.s32.totalorder 1, %s22
      %p109 = scmp.lt.s32.totalorder %s22, 3
      %p110 = pnand %p108, %p109
      %p111 = pneg %p110
      // Predicated region
      $region9: #{tpu_custom_call.1} parent=5 // pred_check
        _
      $region10: #{tpu_custom_call.1} parent=5 // pred_check_branch
        %113 = sbr.rel (%p110) target = $region12
      $region11: #{tpu_custom_call.1} parent=5 // pred_region
        %s114 = ssub.s32 %s22, 1
      $region12: #{tpu_custom_call.1} parent=5 // pred_fallthru
        _
      %p115 = scmp.lt.s32.totalorder %s22, 2
      // Predicated region
      $region13: #{tpu_custom_call.1} parent=5 // pred_check
        %p116 = pneg %p115
      $region14: #{tpu_custom_call.1} parent=5 // pred_check_branch
        %118 = sbr.rel (%p116) target = $region16
      $region15: #{tpu_custom_call.1} parent=5 // pred_region
        // Predicated region
        $region17: #{tpu_custom_call.1} parent=15 // pred_check
          %p119 = pneg %p42
        $region18: #{tpu_custom_call.1} parent=15 // pred_check_branch
          %121 = sbr.rel (%p119) target = $region20
        $region19: #{tpu_custom_call.1} parent=15 // pred_region
          %s122 = sand.u32 %s32, 1
          %s123 = scalar_lea.sflag [#allocation5], %s122
          %s124 = sand.u32 %s32, 1
          %s125 = smul.addr %s124, 8
          %s126 = scalar_lea.vmem [#allocation4], %s125
          %s128 = ssub.s32 128, 128
          %129 = vsyncadd %s123, %s128
          %s130 = smul.addr %s22, 128
          %s131 = scalar_lea.hbm %s1, %s130
          %s133 = sshll.u32 %s126, 4
          %s134 = int_to_ptr.vmem [resolvable:$true] %s133
          %136 = dma.hbm_to_vmem [thread:$0]  %s131, 128, %s134, %s123
        $region20: #{tpu_custom_call.1} parent=15 // pred_fallthru
          _
        // Predicated region
        $region21: #{tpu_custom_call.1} parent=15 // pred_check
          %p137 = pneg %p68
        $region22: #{tpu_custom_call.1} parent=15 // pred_check_branch
          %139 = sbr.rel (%p137) target = $region24
        $region23: #{tpu_custom_call.1} parent=15 // pred_region
          %s140 = sand.u32 %s58, 1
          %s141 = scalar_lea.sflag [#allocation8], %s140
          %s142 = sand.u32 %s58, 1
          %s143 = smul.addr %s142, 8
          %s144 = scalar_lea.vmem [#allocation7], %s143
          %s146 = ssub.s32 128, 128
          %147 = vsyncadd %s141, %s146
          %s148 = smul.addr %s22, 128
          %s149 = scalar_lea.hbm %s2, %s148
          %s151 = sshll.u32 %s144, 4
          %s152 = int_to_ptr.vmem [resolvable:$true] %s151
          %154 = dma.hbm_to_vmem [thread:$0]  %s149, 128, %s152, %s141
        $region24: #{tpu_custom_call.1} parent=15 // pred_fallthru
          _
      $region16: #{tpu_custom_call.1} parent=5 // pred_fallthru
        _
      %p155 = scmp.le.s32.totalorder 1, %s22
      %p156 = scmp.lt.s32.totalorder %s22, 3
      %p157 = pnand %p155, %p156
      %p158 = pneg %p157
      // Predicated region
      $region25: #{tpu_custom_call.1} parent=5 // pred_check
        _
      $region26: #{tpu_custom_call.1} parent=5 // pred_check_branch
        %160 = sbr.rel (%p157) target = $region28
      $region27: #{tpu_custom_call.1} parent=5 // pred_region
        %s161 = ssub.s32 %s22, 1
        %s162 = sand.u32 %s35, 1
        %s163 = scalar_lea.sflag [#allocation5], %s162
        %s164 = sand.u32 %s35, 1
        %s165 = smul.addr %s164, 8
        %s166 = scalar_lea.vmem [#allocation4], %s165
        // Predicated region
        $region29: #{tpu_custom_call.1} parent=27 // pred_check
          %p167 = pneg %p48
        $region30: #{tpu_custom_call.1} parent=27 // pred_check_branch
          %169 = sbr.rel (%p167) target = $region32
        $region31: #{tpu_custom_call.1} parent=27 // pred_region
          %170 = dma.done %s163, 128
        $region32: #{tpu_custom_call.1} parent=27 // pred_fallthru
          _
        %s171 = sand.u32 %s61, 1
        %s172 = scalar_lea.sflag [#allocation8], %s171
        %s173 = sand.u32 %s61, 1
        %s174 = smul.addr %s173, 8
        %s175 = scalar_lea.vmem [#allocation7], %s174
        // Predicated region
        $region33: #{tpu_custom_call.1} parent=27 // pred_check
          %p176 = pneg %p74
        $region34: #{tpu_custom_call.1} parent=27 // pred_check_branch
          %178 = sbr.rel (%p176) target = $region36
        $region35: #{tpu_custom_call.1} parent=27 // pred_region
          %179 = dma.done %s172, 128
        $region36: #{tpu_custom_call.1} parent=27 // pred_fallthru
          _
        %s180 = sand.u32 %s35, 1
        %s181 = scalar_lea.sflag [#allocation5], %s180
        %s182 = sand.u32 %s35, 1
        %s183 = smul.addr %s182, 8
        %s184 = scalar_lea.vmem [#allocation4], %s183
        %p185 = pneg %p48
        %p186 = pneg %p45
        %s187 = sand.u32 %s61, 1
        %s188 = scalar_lea.sflag [#allocation8], %s187
        %s189 = sand.u32 %s61, 1
        %s190 = smul.addr %s189, 8
        %s191 = scalar_lea.vmem [#allocation7], %s190
        %p192 = pneg %p74
        %p193 = pneg %p71
        %p194 = pneg %p100
        %p195 = pneg %p97
        %s196 = sand.u32 %s87, 1
        %s197 = scalar_lea.sflag [#allocation6], %s196
        %s198 = sand.u32 %s87, 1
        %s199 = smul.addr %s198, 8
        %s200 = scalar_lea.vmem [#allocation9], %s199
        %s201 = sld [smem:[#allocation3]]
        %s202 = sld [smem:[#allocation3 + $0x1]]
        %s203 = sld [smem:[#allocation3 + $0x2]]
        %s204 = sld [smem:[#allocation3 + $0x3]]
        %v205 = vld [vmem:[%s166] sm:$0xff]
        %v206 = vld [vmem:[%s175] sm:$0xff]
        %v207 = vstv %s201
        %vm208 = vcmp.ge.f32.partialorder %v205, %v207
        %v209 = vstv %s202
        %vm210 = vcmp.le.f32.partialorder %v205, %v209
        %vm211 = vmand %vm208, %vm210
        %v212 = vstv %s203
        %vm213 = vcmp.ge.f32.partialorder %v206, %v212
        %vm214 = vmand %vm211, %vm213
        %v215 = vstv %s204
        %vm216 = vcmp.le.f32.partialorder %v206, %v215
        %vm217 = vmand %vm214, %vm216
        %v218 = vsel %vm217, 0.0, 1.0
        %219 = vst [vmem:[%s200] sm:$0xff] %v218
        %s220 = sand.u32 %s87, 1
        %s221 = scalar_lea.sflag [#allocation6], %s220
        %s222 = sand.u32 %s87, 1
        %s223 = smul.addr %s222, 8
        %s224 = scalar_lea.vmem [#allocation9], %s223
        // Predicated region
        $region37: #{tpu_custom_call.1} parent=27 // pred_check
          %p225 = pneg %p97
        $region38: #{tpu_custom_call.1} parent=27 // pred_check_branch
          %227 = sbr.rel (%p225) target = $region40
        $region39: #{tpu_custom_call.1} parent=27 // pred_region
          %s229 = ssub.s32 128, 128
          %230 = vsyncadd %s221, %s229
          %s231 = smul.addr %s27, 128
          %s232 = scalar_lea.hbm %s3, %s231
          %s234 = sshll.u32 %s224, 4
          %s235 = int_to_ptr.vmem [resolvable:$true] %s234
          %237 = dma.vmem_to_hbm [thread:$0]  %s235, 128, %s232, %s221
        $region40: #{tpu_custom_call.1} parent=27 // pred_fallthru
          _
      $region28: #{tpu_custom_call.1} parent=5 // pred_fallthru
        _
      %p238 = scmp.le.s32.totalorder 2, %s22
      // Predicated region
      $region41: #{tpu_custom_call.1} parent=5 // pred_check
        %p239 = pneg %p238
      $region42: #{tpu_custom_call.1} parent=5 // pred_check_branch
        %241 = sbr.rel (%p239) target = $region44
      $region43: #{tpu_custom_call.1} parent=5 // pred_region
        %s242 = ssub.s32 %s22, 2
        // Predicated region
        $region45: #{tpu_custom_call.1} parent=43 // pred_check
          %p243 = pneg %p103
        $region46: #{tpu_custom_call.1} parent=43 // pred_check_branch
          %245 = sbr.rel (%p243) target = $region48
        $region47: #{tpu_custom_call.1} parent=43 // pred_region
          %s246 = sand.u32 %s88, 1
          %s247 = scalar_lea.sflag [#allocation6], %s246
          %s248 = sand.u32 %s88, 1
          %s249 = smul.addr %s248, 8
          %s250 = scalar_lea.vmem [#allocation9], %s249
          %251 = dma.done %s247, 128
        $region48: #{tpu_custom_call.1} parent=43 // pred_fallthru
          _
      $region44: #{tpu_custom_call.1} parent=5 // pred_fallthru
        _
    $region6: #{tpu_custom_call.1} parent=1 // loop_footer
      %s26 = sadd.s32 1, %s22
    $region7: #{tpu_custom_call.1} parent=1 // loop_footer_branch
      %21 = sbr.rel target = $region3
    $region8: #{tpu_custom_call.1} parent=1 // loop_exit
      _
    %252 = vsyncpa [#allocation5], 1
    %s253 = scalar_lea.sflag [#allocation5], 1
    %254 = vsyncpa %s253, 1
    %255 = vsyncpa [#allocation8], 1
    %s256 = scalar_lea.sflag [#allocation8], 1
    %257 = vsyncpa %s256, 1
    %258 = vsyncpa [#allocation6], 1
    %s259 = scalar_lea.sflag [#allocation6], 1
    %260 = vsyncpa %s259, 1

</llo_original>
